<compile_context>
chip_gen: v7x
topology: tpu7x:2x2x1
jax: 0.10.0
libtpu: 0.0.40
codegen_flags: <defaults>
</compile_context>

<pallas_src>
import functools

import numpy as np
import jax
import jax.numpy as jnp
from jax import lax
from jax.experimental import pallas as pl
from jax.experimental.pallas import tpu as pltpu

NUM_SPECIAL = 3               # len(DefaultTokenIndex): NULL=0, MASK=1, CLS=2
NUM_AA = 20                   # len(AminoAcid)
EMB_DIM = NUM_AA              # embedding_dim = len(AminoAcid)
VOCAB = NUM_SPECIAL + NUM_AA  # 23 rows in the blosum buffer

GROUP = 8                     # sublane rows (8*128 = 1024 tokens) fused into one MXU matmul
VP = 24                       # vocab padded to a multiple of 8 (keeps in-kernel reshapes free)
EP = 24                       # emb rows padded likewise (matches the 20->24 sublane padding)
LANES = 128

# BLOSUM62 scores, amino-acid order: A R N D C Q E G H I L K M F P S T W Y V
_BLOSUM62 = np.array([
    [ 4,-1,-2,-2, 0,-1,-1, 0,-2,-1,-1,-1,-1,-2,-1, 1, 0,-3,-2, 0],
    [-1, 5, 0,-2,-3, 1, 0,-2, 0,-3,-2, 2,-1,-3,-2,-1,-1,-3,-2,-3],
    [-2, 0, 6, 1,-3, 0, 0, 0, 1,-3,-3, 0,-2,-3,-2, 1, 0,-4,-2,-3],
    [-2,-2, 1, 6,-3, 0, 2,-1,-1,-3,-4,-1,-3,-3,-1, 0,-1,-4,-3,-3],
    [ 0,-3,-3,-3, 9,-3,-4,-3,-3,-1,-1,-3,-1,-2,-3,-1,-1,-2,-2,-1],
    [-1, 1, 0, 0,-3, 5, 2,-2, 0,-3,-2, 1, 0,-3,-1, 0,-1,-2,-1,-2],
    [-1, 0, 0, 2,-4, 2, 5,-2, 0,-3,-3, 1,-2,-3,-1, 0,-1,-3,-2,-2],
    [ 0,-2, 0,-1,-3,-2,-2, 6,-2,-4,-4,-2,-3,-3,-2, 0,-2,-2,-3,-3],
    [-2, 0, 1,-1,-3, 0, 0,-2, 8,-3,-3,-1,-2,-1,-2,-1,-2,-2, 2,-3],
    [-1,-3,-3,-3,-1,-3,-3,-4,-3, 4, 2,-3, 1, 0,-3,-2,-1,-3,-1, 3],
    [-1,-2,-3,-4,-1,-2,-3,-4,-3, 2, 4,-2, 2, 0,-3,-2,-1,-2,-1, 1],
    [-1, 2, 0,-1,-3, 1, 1,-2,-1,-3,-2, 5,-1,-3,-1, 0,-1,-3,-2,-2],
    [-1,-1,-2,-3,-1, 0,-2,-3,-2, 1, 2,-1, 5, 0,-2,-1,-1,-1,-1, 1],
    [-2,-3,-3,-3,-2,-3,-3,-3,-1, 0, 0,-3, 0, 6,-4,-2,-2, 1, 3,-1],
    [-1,-2,-2,-1,-3,-1,-1,-2,-2,-3,-3,-1,-2,-4, 7,-1,-1,-4,-3,-2],
    [ 1,-1, 1, 0,-1, 0, 0, 0,-1,-2,-2, 0,-1,-2,-1, 4, 1,-3,-2,-2],
    [ 0,-1, 0,-1,-1,-1,-1,-2,-2,-1,-1,-1,-1,-2,-1, 1, 5,-2,-2, 0],
    [-3,-3,-4,-4,-2,-2,-3,-2,-2,-3,-2,-3,-1, 1,-4,-3,-2,11, 2,-3],
    [-2,-2,-2,-3,-2,-1,-2,-3, 2,-1,-1,-2,-1, 3,-3,-2,-2, 2, 7,-1],
    [ 0,-3,-3,-3,-1,-2,-2,-3,-3, 3, 1,-2, 1,-1,-2,-2, 0,-3,-1, 4],
], dtype=np.float32)


def _blosum_embedding_kernel(idx_ref, tbig_ref, out_ref):
    # idx_ref:  (rows, 128)            int32   lane-dense token indices (ragged tail padded)
    # tbig_ref: (8*EP, 8*VP)=(192,192) float32 block-diag kron(I8, fused.T), VMEM-resident
    # out_ref:  (rows, EP, 128)        float32 lane-dense output slab
    rows = idx_ref.shape[0]            # static, multiple of GROUP
    n_groups = rows // GROUP

    tbig = tbig_ref[...]                                               # (192, 192)
    iota_v = lax.broadcasted_iota(jnp.int32, (GROUP, VP, LANES), 1)    # hoisted, loop-invariant

    def body(g, carry):
        r0 = pl.multiple_of(g * GROUP, GROUP)
        idx8 = idx_ref[pl.ds(r0, GROUP), :]                            # (8, 128) i32
        # One-hot with VOCAB on sublanes / tokens on lanes; stays in vregs (24 vregs).
        oh = (idx8[:, None, :] == iota_v).astype(jnp.float32)          # (8, VP, 128)
        # Single MXU matmul handles all 8 rows: block-diagonal table x stacked one-hots.
        # Exact in f32: every output element is a single 1.0 * table_value product.
        res = jnp.dot(tbig, oh.reshape(GROUP * VP, LANES),
                      preferred_element_type=jnp.float32)              # (8*EP, 128)
        # reshape is a free relabel (EP, VP multiples of 8); lane-dense, unmasked stores.
        out_ref[pl.ds(r0, GROUP), :, :] = res.reshape(GROUP, EP, LANES)
        return carry

    lax.fori_loop(0, n_groups, body, 0, unroll=True)


def _round_up(x, m):
    return (x + m - 1) // m * m


@functools.partial(jax.jit, static_argnames=("tile",))
def blosum_embedding(token_indices, special_weight, blosum_table, *, tile=32768):
    """token_indices: (B, L) int. Returns (B, L, EMB_DIM) float32 (same as the PyTorch module).

    tile = tokens per grid step (rounded to a multiple of 1024). With the lane-dense layouts a
    32768-token step uses ~6.6 MiB of double-buffered VMEM (safe on v5e/v6e/v7x) and ~3.3 MB of
    per-step DMA, amortizing the ~0.35 us pipeline overhead on all generations.
    """
    B, L = token_indices.shape
    n = B * L
    tokens_per_group = GROUP * LANES                     # 1024

    # ---- exact table fusion (done once under jit; callers may also precompute) ----
    # fused[v] = special_weight[v if v < NUM_SPECIAL else 0] + blosum[v]
    row_ids = jnp.where(jnp.arange(VOCAB) < NUM_SPECIAL, jnp.arange(VOCAB), 0)
    fused = (blosum_table.astype(jnp.float32)
             + special_weight.astype(jnp.float32)[row_ids])            # (23, 20)
    tpad = jnp.zeros((EP, VP), jnp.float32).at[:EMB_DIM, :VOCAB].set(fused.T)
    tbig = jnp.kron(jnp.eye(GROUP, dtype=jnp.float32), tpad)           # (192, 192) block-diag

    # ---- lane-dense index slab: (R, 128) int32, 4 B/token ----
    n_pad = _round_up(n, tokens_per_group)
    idx = token_indices.reshape(-1).astype(jnp.int32)
    if n_pad != n:
        idx = jnp.pad(idx, (0, n_pad - n))               # pad tokens -> row 0; sliced off below
    R = n_pad // LANES
    idx2 = idx.reshape(R, LANES)

    # ---- tile selection (static) ----
    tile_eff = max(tokens_per_group, _round_up(int(tile), tokens_per_group))
    tile_eff = min(tile_eff, n_pad)
    # Keep >= 2 grid steps when there is enough work, so ("parallel",) can use both v7x cores.
    if tile_eff == n_pad and n_pad >= 2 * tokens_per_group:
        tile_eff = _round_up(n_pad // 2, tokens_per_group)
    rows = tile_eff // LANES                             # multiple of GROUP
    grid = pl.cdiv(R, rows)                              # ragged last block handled by Pallas

    out3 = pl.pallas_call(
        _blosum_embedding_kernel,
        out_shape=jax.ShapeDtypeStruct((R, EP, LANES), jnp.float32),
        grid=(grid,),
        in_specs=[
            pl.BlockSpec((rows, LANES), lambda i: (i, 0)),             # lane-dense indices
            pl.BlockSpec((GROUP * EP, GROUP * VP), lambda i: (0, 0)),  # fetched once, resident
        ],
        out_specs=pl.BlockSpec((rows, EP, LANES), lambda i: (i, 0, 0)),
        compiler_params=pltpu.CompilerParams(
            dimension_semantics=("parallel",)),
    )(idx2, tbig)

    # Layout plumbing outside the kernel (single fused XLA transpose):
    # (R, EP, 128) -> (R, 128, EMB) -> (n, EMB) -> (B, L, EMB)
    out = out3[:, :EMB_DIM, :].transpose(0, 2, 1).reshape(n_pad, EMB_DIM)
    return out[:n].reshape(B, L, EMB_DIM)


def _reference(token_indices, special_weight, blosum_table):
    # Plain-JAX transcription of the PyTorch forward (two separate gathers + add).
    mask = token_indices < NUM_SPECIAL
    return special_weight[token_indices * mask] + blosum_table[token_indices]


if __name__ == "__main__":
    key = jax.random.PRNGKey(0)
    k_weights, k_tok1, k_tok2 = jax.random.split(key, 3)

    # Embedding(3, 20, padding_idx=0): ~N(0,1) init with the padding row zeroed.
    special_weight = jax.random.normal(k_weights, (NUM_SPECIAL, EMB_DIM), dtype=jnp.float32)
    special_weight = special_weight.at[0].set(0.0)

    # Registered buffer: [zeros(3,20); BLOSUM62(20,20)] / max(abs(.)) — built in-script.
    blosum_table = jnp.concatenate(
        [jnp.zeros((NUM_SPECIAL, EMB_DIM), jnp.float32), jnp.asarray(_BLOSUM62)], axis=0)
    blosum_table = blosum_table / jnp.max(jnp.abs(blosum_table))

    # Small case: batch=2, seq=8 (single grid step, padded up to one 1024-token group).
    B, L = 2, 8
    token_indices = jax.random.randint(k_tok1, (B, L), 0, VOCAB, dtype=jnp.int32)
    out = jax.block_until_ready(blosum_embedding(token_indices, special_weight, blosum_table))
    ref = _reference(token_indices, special_weight, blosum_table)
    assert out.shape == (B, L, EMB_DIM) and out.dtype == jnp.float32
    assert jnp.allclose(out, ref, atol=1e-6), "mismatch vs reference (small case)"

    # Multi-step grid with a ragged last block: n=2100 -> n_pad=3072, tile=2048 -> grid=2.
    B2, L2 = 3, 700
    token_indices2 = jax.random.randint(k_tok2, (B2, L2), 0, VOCAB, dtype=jnp.int32)
    out2 = jax.block_until_ready(
        blosum_embedding(token_indices2, special_weight, blosum_table, tile=2048))
    ref2 = _reference(token_indices2, special_weight, blosum_table)
    assert out2.shape == (B2, L2, EMB_DIM)
    assert jnp.allclose(out2, ref2, atol=1e-6), "mismatch vs reference (ragged case)"

    print("KERNEL_OK")
</pallas_src>

<mosaic_0001>
module attributes {stable_mosaic.version = 11 : i64} {
  func.func @_blosum_embedding_kernel(%arg0: i32, %arg1: memref<8x128xi32, #tpu.memory_space<vmem>>, %arg2: memref<192x192xf32, #tpu.memory_space<vmem>>, %arg3: memref<8x24x128xf32, #tpu.memory_space<vmem>>) attributes {dimension_semantics = [#tpu.dimension_semantics<parallel>], iteration_bounds = array<i64: 1>, scalar_prefetch = 0 : i64, scratch_operands = 0 : i64, tpu.core_type = #tpu.core_type<tc>, window_params = [{transform_indices = @transform_0, window_bounds = array<i64: 8, 128>}, {pipeline_mode = #tpu.pipeline_mode<synchronous>, transform_indices = @transform_1, window_bounds = array<i64: 192, 192>}, {transform_indices = @transform_2, window_bounds = array<i64: 8, 24, 128>}]} {
    %c0 = arith.constant 0 : index
    %c0_0 = arith.constant 0 : index
    %0 = vector.load %arg2[%c0, %c0_0] : memref<192x192xf32, #tpu.memory_space<vmem>>, vector<192x192xf32>
    %1 = tpu.iota {dimensions = array<i32: 1>} : vector<8x24x128xi32>
    %c0_i32 = arith.constant 0 : i32
    %c8_i32 = arith.constant 8 : i32
    %2 = arith.muli %c0_i32, %c8_i32 : i32
    %3 = tpu.assume_multiple %2, 8 : i32
    %4 = arith.index_cast %3 : i32 to index
    %c0_1 = arith.constant 0 : index
    %5 = vector.load %arg1[%4, %c0_1] : memref<8x128xi32, #tpu.memory_space<vmem>>, vector<8x128xi32>
    %6 = vector.shape_cast %5 : vector<8x128xi32> to vector<8x1x128xi32>
    %7 = vector.broadcast %6 : vector<8x1x128xi32> to vector<8x24x128xi32>
    %8 = arith.cmpi eq, %7, %1 : vector<8x24x128xi32>
    %9 = arith.extui %8 : vector<8x24x128xi1> to vector<8x24x128xi32>
    %10 = arith.sitofp %9 : vector<8x24x128xi32> to vector<8x24x128xf32>
    %11 = vector.shape_cast %10 : vector<8x24x128xf32> to vector<192x128xf32>
    %cst = arith.constant dense<0.000000e+00> : vector<192x128xf32>
    %12 = tpu.matmul %0, %11, %cst {dimension_numbers = #tpu.dot_dimension_numbers<[1], [0], [0], [1], [0, 0, 1, 1], [], []>} : vector<192x192xf32>, vector<192x128xf32>, vector<192x128xf32> -> vector<192x128xf32>
    %13 = vector.shape_cast %12 : vector<192x128xf32> to vector<8x24x128xf32>
    %14 = arith.index_cast %3 : i32 to index
    %c0_2 = arith.constant 0 : index
    %c0_3 = arith.constant 0 : index
    %15 = vector.load %arg3[%14, %c0_2, %c0_3] : memref<8x24x128xf32, #tpu.memory_space<vmem>>, vector<8x24x128xf32>
    tpu.vector_store %arg3[%14, %c0_2, %c0_3], %13 {strides = array<i32>} : memref<8x24x128xf32, #tpu.memory_space<vmem>>, vector<8x24x128xf32>,
    %c1_i32 = arith.constant 1 : i32
    return
  }
  func.func @transform_0(%arg0: i32) -> (i32, i32) {
    %c0_i32 = arith.constant 0 : i32
    %c0_i32_0 = arith.constant 0 : i32
    return %arg0, %c0_i32 : i32, i32
  }
  func.func @transform_1(%arg0: i32) -> (i32, i32) {
    %c0_i32 = arith.constant 0 : i32
    %c0_i32_0 = arith.constant 0 : i32
    %c0_i32_1 = arith.constant 0 : i32
    return %c0_i32, %c0_i32_0 : i32, i32
  }
  func.func @transform_2(%arg0: i32) -> (i32, i32, i32) {
    %c0_i32 = arith.constant 0 : i32
    %c0_i32_0 = arith.constant 0 : i32
    %c0_i32_1 = arith.constant 0 : i32
    return %arg0, %c0_i32, %c0_i32_0 : i32, i32, i32
  }
}

</mosaic_0001>

<llo_original>
// kernel: blosum_embedding.1
$region0: #{blosum_embedding.1}
  #allocation0 [shape = 'u32[]', space=smem, size = 0x4, offset = 0x4, fixed_abs, tag = 'smem constant byte address 0x4 - core index']
  #allocation1 [shape = 'u32[144,128]{1,0:T(1,128)}', space=vmem, size = 0x12000, scoped, tag = 'internal scratch']
  %s0 = inlined_call_operand.vmem [shape: s32[8,128], index: 0, kind: input, shape index: {}]
  %s1 = inlined_call_operand.vmem [shape: f32[192,192], index: 1, kind: input, shape index: {}]
  %s2 = inlined_call_operand.vmem [shape: f32[8,24,128], index: 2, kind: output, shape index: {}]
  %s3 = sld [smem:[#allocation0]]
  $region18: #{blosum_embedding.1} parent=0
    _
  %s5 = ssub.s32 1, %s3
  %s6 = scalar_select 0, %s5, %s3
  // Predicated region
  $region2: #{blosum_embedding.1} parent=0 // pred_check
    _
  $region3: #{blosum_embedding.1} parent=0 // pred_check_branch
    %8 = sbr.rel (0) target = $region5
  $region4: #{blosum_embedding.1} parent=0 // pred_region
    _
  $region5: #{blosum_embedding.1} parent=0 // pred_fallthru
    _
  // Predicated region
  $region6: #{blosum_embedding.1} parent=0 // pred_check
    _
  $region7: #{blosum_embedding.1} parent=0 // pred_check_branch
    %10 = sbr.rel (0) target = $region9
  $region8: #{blosum_embedding.1} parent=0 // pred_region
    _
  $region9: #{blosum_embedding.1} parent=0 // pred_fallthru
    _
  %v11 = vld [vmem:[%s1] sm:$0xff]
  %v12 = vld [vmem:[%s1 + $0x8] sm:$0xff]
  %v13 = vld [vmem:[%s1 + $0x10] sm:$0xff]
  %v14 = vld [vmem:[%s1 + $0x18] sm:$0xff]
  %v15 = vld [vmem:[%s1 + $0x20] sm:$0xff]
  %v16 = vld [vmem:[%s1 + $0x28] sm:$0xff]
  %v17 = vld [vmem:[%s1 + $0x30] sm:$0xff]
  %v18 = vld [vmem:[%s1 + $0x38] sm:$0xff]
  %v19 = vld [vmem:[%s1 + $0x40] sm:$0xff]
  %v20 = vld [vmem:[%s1 + $0x48] sm:$0xff]
  %v21 = vld [vmem:[%s1 + $0x50] sm:$0xff]
  %v22 = vld [vmem:[%s1 + $0x58] sm:$0xff]
  %v23 = vld [vmem:[%s1 + $0x60] sm:$0xff]
  %v24 = vld [vmem:[%s1 + $0x68] sm:$0xff]
  %v25 = vld [vmem:[%s1 + $0x70] sm:$0xff]
  %v26 = vld [vmem:[%s1 + $0x78] sm:$0xff]
  %v27 = vld [vmem:[%s1 + $0x80] sm:$0xff]
  %v28 = vld [vmem:[%s1 + $0x88] sm:$0xff]
  %v29 = vld [vmem:[%s1 + $0x90] sm:$0xff]
  %v30 = vld [vmem:[%s1 + $0x98] sm:$0xff]
  %v31 = vld [vmem:[%s1 + $0xa0] sm:$0xff]
  %v32 = vld [vmem:[%s1 + $0xa8] sm:$0xff]
  %v33 = vld [vmem:[%s1 + $0xb0] sm:$0xff]
  %v34 = vld [vmem:[%s1 + $0xb8] sm:$0xff]
  %v35 = vld [vmem:[%s1 + $0xc0] sm:$0xff]
  %v36 = vld [vmem:[%s1 + $0xc8] sm:$0xff]
  %v37 = vld [vmem:[%s1 + $0xd0] sm:$0xff]
  %v38 = vld [vmem:[%s1 + $0xd8] sm:$0xff]
  %v39 = vld [vmem:[%s1 + $0xe0] sm:$0xff]
  %v40 = vld [vmem:[%s1 + $0xe8] sm:$0xff]
  %v41 = vld [vmem:[%s1 + $0xf0] sm:$0xff]
  %v42 = vld [vmem:[%s1 + $0xf8] sm:$0xff]
  %v43 = vld [vmem:[%s1 + $0x100] sm:$0xff]
  %v44 = vld [vmem:[%s1 + $0x108] sm:$0xff]
  %v45 = vld [vmem:[%s1 + $0x110] sm:$0xff]
  %v46 = vld [vmem:[%s1 + $0x118] sm:$0xff]
  %v47 = vld [vmem:[%s1 + $0x120] sm:$0xff]
  %v48 = vld [vmem:[%s1 + $0x128] sm:$0xff]
  %v49 = vld [vmem:[%s1 + $0x130] sm:$0xff]
  %v50 = vld [vmem:[%s1 + $0x138] sm:$0xff]
  %v51 = vld [vmem:[%s1 + $0x140] sm:$0xff]
  %v52 = vld [vmem:[%s1 + $0x148] sm:$0xff]
  %v53 = vld [vmem:[%s1 + $0x150] sm:$0xff]
  %v54 = vld [vmem:[%s1 + $0x158] sm:$0xff]
  %v55 = vld [vmem:[%s1 + $0x160] sm:$0xff]
  %v56 = vld [vmem:[%s1 + $0x168] sm:$0xff]
  %v57 = vld [vmem:[%s1 + $0x170] sm:$0xff]
  %v58 = vld [vmem:[%s1 + $0x178] sm:$0xff]
  %v59 = vlaneseq
  %v60 = vshrl.u32 %v59, 7
  %v61 = vadd.s32 %v60, 8
  %v62 = vadd.s32 %v60, 16
  %v63 = vld [vmem:[%s0] sm:$0xff]
  %v64 = vcombine.high %v63, %v63
  %v66 = vunpack.c.l.s4 1966171168
  %v67 = vunpack.c.0.s8 %v66
  %v68 = vlaneseq
  %v69 = vshrl.u32 %v68, 7
  %v70 = vsub.s32 %v67, %v69
  %v71 = vrot.slane %v63, %v70
  %v73 = vunpack.c.l.s4 1966171168
  %v74 = vunpack.c.0.s8 %v73
  %v75 = vlaneseq
  %v76 = vshrl.u32 %v75, 7
  %v77 = vsub.s32 %v74, %v76
  %v78 = vrot.slane %v64, %v77
  %v79 = vcombine.high %v71, %v71
  %v80 = vcombine.high %v78, %v78
  %v82 = vunpack.c.l.s4 1966171168
  %v83 = vunpack.c.0.s8 %v82
  %v84 = vlaneseq
  %v85 = vshrl.u32 %v84, 7
  %v86 = vsub.s32 %v83, %v85
  %v87 = vrot.slane %v71, %v86
  %v89 = vunpack.c.l.s4 1966171168
  %v90 = vunpack.c.0.s8 %v89
  %v91 = vlaneseq
  %v92 = vshrl.u32 %v91, 7
  %v93 = vsub.s32 %v90, %v92
  %v94 = vrot.slane %v78, %v93
  %v96 = vunpack.c.l.s4 1966171168
  %v97 = vunpack.c.0.s8 %v96
  %v98 = vlaneseq
  %v99 = vshrl.u32 %v98, 7
  %v100 = vsub.s32 %v97, %v99
  %v101 = vrot.slane %v79, %v100
  %v103 = vunpack.c.l.s4 1966171168
  %v104 = vunpack.c.0.s8 %v103
  %v105 = vlaneseq
  %v106 = vshrl.u32 %v105, 7
  %v107 = vsub.s32 %v104, %v106
  %v108 = vrot.slane %v80, %v107
  %v109 = vcombine.high %v87, %v87
  %v110 = vcombine.high %v94, %v94
  %v111 = vcombine.high %v101, %v101
  %v112 = vcombine.high %v108, %v108
  %v113 = vlaneseq
  %v114 = vshrl.u32 %v113, 7
  %v115 = vsub.s32 0, %v114
  %v116 = vrot.slane %v87, %v115
  %v117 = vlaneseq
  %v118 = vshrl.u32 %v117, 7
  %v119 = vsub.s32 0, %v118
  %v120 = vrot.slane %v101, %v119
  %v121 = vlaneseq
  %v122 = vshrl.u32 %v121, 7
  %v123 = vsub.s32 0, %v122
  %v124 = vrot.slane %v109, %v123
  %v125 = vlaneseq
  %v126 = vshrl.u32 %v125, 7
  %v127 = vsub.s32 0, %v126
  %v128 = vrot.slane %v111, %v127
  %v129 = vlaneseq
  %v130 = vshrl.u32 %v129, 7
  %v131 = vsub.s32 0, %v130
  %v132 = vrot.slane %v94, %v131
  %v133 = vlaneseq
  %v134 = vshrl.u32 %v133, 7
  %v135 = vsub.s32 0, %v134
  %v136 = vrot.slane %v108, %v135
  %v137 = vlaneseq
  %v138 = vshrl.u32 %v137, 7
  %v139 = vsub.s32 0, %v138
  %v140 = vrot.slane %v110, %v139
  %v141 = vlaneseq
  %v142 = vshrl.u32 %v141, 7
  %v143 = vsub.s32 0, %v142
  %v144 = vrot.slane %v112, %v143
  %vm145 = vcmp.eq.s32.totalorder %v116, %v60
  %vm146 = vcmp.eq.s32.totalorder %v116, %v61
  %vm147 = vcmp.eq.s32.totalorder %v116, %v62
  %vm148 = vcmp.eq.s32.totalorder %v120, %v60
  %vm149 = vcmp.eq.s32.totalorder %v120, %v61
  %vm150 = vcmp.eq.s32.totalorder %v120, %v62
  %vm151 = vcmp.eq.s32.totalorder %v124, %v60
  %vm152 = vcmp.eq.s32.totalorder %v124, %v61
  %vm153 = vcmp.eq.s32.totalorder %v124, %v62
  %vm154 = vcmp.eq.s32.totalorder %v128, %v60
  %vm155 = vcmp.eq.s32.totalorder %v128, %v61
  %vm156 = vcmp.eq.s32.totalorder %v128, %v62
  %vm157 = vcmp.eq.s32.totalorder %v132, %v60
  %vm158 = vcmp.eq.s32.totalorder %v132, %v61
  %vm159 = vcmp.eq.s32.totalorder %v132, %v62
  %vm160 = vcmp.eq.s32.totalorder %v136, %v60
  %vm161 = vcmp.eq.s32.totalorder %v136, %v61
  %vm162 = vcmp.eq.s32.totalorder %v136, %v62
  %vm163 = vcmp.eq.s32.totalorder %v140, %v60
  %vm164 = vcmp.eq.s32.totalorder %v140, %v61
  %vm165 = vcmp.eq.s32.totalorder %v140, %v62
  %vm166 = vcmp.eq.s32.totalorder %v144, %v60
  %vm167 = vcmp.eq.s32.totalorder %v144, %v61
  %vm168 = vcmp.eq.s32.totalorder %v144, %v62
  %v169 = vsel %vm145, 1, 0
  %v170 = vsel %vm146, 1, 0
  %v171 = vsel %vm147, 1, 0
  %v172 = vsel %vm148, 1, 0
  %v173 = vsel %vm149, 1, 0
  %v174 = vsel %vm150, 1, 0
  %v175 = vsel %vm151, 1, 0
  %v176 = vsel %vm152, 1, 0
  %v177 = vsel %vm153, 1, 0
  %v178 = vsel %vm154, 1, 0
  %v179 = vsel %vm155, 1, 0
  %v180 = vsel %vm156, 1, 0
  %v181 = vsel %vm157, 1, 0
  %v182 = vsel %vm158, 1, 0
  %v183 = vsel %vm159, 1, 0
  %v184 = vsel %vm160, 1, 0
  %v185 = vsel %vm161, 1, 0
  %v186 = vsel %vm162, 1, 0
  %v187 = vsel %vm163, 1, 0
  %v188 = vsel %vm164, 1, 0
  %v189 = vsel %vm165, 1, 0
  %v190 = vsel %vm166, 1, 0
  %v191 = vsel %vm167, 1, 0
  %v192 = vsel %vm168, 1, 0
  %v193 = vcvt.s32.f32 %v169
  %v194 = vcvt.s32.f32 %v170
  %v195 = vcvt.s32.f32 %v171
  %v196 = vcvt.s32.f32 %v172
  %v197 = vcvt.s32.f32 %v173
  %v198 = vcvt.s32.f32 %v174
  %v199 = vcvt.s32.f32 %v175
  %v200 = vcvt.s32.f32 %v176
  %v201 = vcvt.s32.f32 %v177
  %v202 = vcvt.s32.f32 %v178
  %v203 = vcvt.s32.f32 %v179
  %v204 = vcvt.s32.f32 %v180
  %v205 = vcvt.s32.f32 %v181
  %v206 = vcvt.s32.f32 %v182
  %v207 = vcvt.s32.f32 %v183
  %v208 = vcvt.s32.f32 %v184
  %v209 = vcvt.s32.f32 %v185
  %v210 = vcvt.s32.f32 %v186
  %v211 = vcvt.s32.f32 %v187
  %v212 = vcvt.s32.f32 %v188
  %v213 = vcvt.s32.f32 %v189
  %v214 = vcvt.s32.f32 %v190
  %v215 = vcvt.s32.f32 %v191
  %v216 = vcvt.s32.f32 %v192
  %vm217 = vcmask 523264
  %v219 = vsel %vm217, %v12, 0
  %v222 = vsel %vm217, %v14, 0
  %v225 = vsel %vm217, %v16, 0
  %v228 = vsel %vm217, %v18, 0
  %v231 = vsel %vm217, %v20, 0
  %v234 = vsel %vm217, %v22, 0
  %v237 = vsel %vm217, %v24, 0
  %v240 = vsel %vm217, %v26, 0
  %v243 = vsel %vm217, %v28, 0
  %v246 = vsel %vm217, %v30, 0
  %v249 = vsel %vm217, %v32, 0
  %v252 = vsel %vm217, %v34, 0
  %v255 = vsel %vm217, %v36, 0
  %v258 = vsel %vm217, %v38, 0
  %v261 = vsel %vm217, %v40, 0
  %v264 = vsel %vm217, %v42, 0
  %v267 = vsel %vm217, %v44, 0
  %v270 = vsel %vm217, %v46, 0
  %v273 = vsel %vm217, %v48, 0
  %v276 = vsel %vm217, %v50, 0
  %v279 = vsel %vm217, %v52, 0
  %v282 = vsel %vm217, %v54, 0
  %v285 = vsel %vm217, %v56, 0
  %v288 = vsel %vm217, %v58, 0
  %290 = vmatprep.subr.mxu0 0.0
  %291 = vmatpush1.msra.mxu0 %v193
  %292 = vmatprep.subr.mxu0 0.0
  %293 = vmatpush1.msra.mxu0 %v194
  %294 = vmatprep.subr.mxu0 0.0
  %295 = vmatpush1.msra.mxu0 %v195
  %296 = vmatprep.subr.mxu0 0.0
  %297 = vmatpush1.msra.mxu0 %v196
  %298 = vmatprep.subr.mxu0 0.0
  %299 = vmatpush1.msra.mxu0 %v197
  %300 = vmatprep.subr.mxu0 0.0
  %301 = vmatpush1.msra.mxu0 %v198
  %302 = vmatprep.subr.mxu0 0.0
  %303 = vmatpush1.msra.mxu0 %v199
  %304 = vmatprep.subr.mxu0 0.0
  %305 = vmatpush1.msra.mxu0 %v200
  %306 = vmatprep.subr.mxu0 0.0
  %307 = vmatpush1.msra.mxu0 %v201
  %308 = vmatprep.subr.mxu0 0.0
  %309 = vmatpush1.msra.mxu0 %v202
  %310 = vmatprep.subr.mxu0 0.0
  %311 = vmatpush1.msra.mxu0 %v203
  %312 = vmatprep.subr.mxu0 0.0
  %313 = vmatpush1.msra.mxu0 %v204
  %314 = vmatprep.subr.mxu0 0.0
  %315 = vmatpush1.msra.mxu0 %v205
  %316 = vmatprep.subr.mxu0 0.0
  %317 = vmatpush1.msra.mxu0 %v206
  %318 = vmatprep.subr.mxu0 0.0
  %319 = vmatpush1.msra.mxu0 %v207
  %320 = vmatprep.subr.mxu0 0.0
  %321 = vmatpush1.msra.mxu0 %v208
  %322 = vmatprep.subr.mxu0 0.0
  %323 = vmatpush1.msra.mxu0 %v209
  %324 = vmatprep.subr.mxu0 0.0
  %325 = vmatpush1.msra.mxu0 %v210
  %326 = vmatprep.subr.mxu0 0.0
  %327 = vmatpush1.msra.mxu0 %v211
  %328 = vmatprep.subr.mxu0 0.0
  %329 = vmatpush1.msra.mxu0 %v212
  %330 = vmatprep.subr.mxu0 0.0
  %331 = vmatpush1.msra.mxu0 %v213
  %332 = vmatprep.subr.mxu0 0.0
  %333 = vmatpush1.msra.mxu0 %v214
  %334 = vmatprep.subr.mxu0 0.0
  %335 = vmatpush1.msra.mxu0 %v215
  %336 = vmatprep.subr.mxu0 0.0
  %337 = vmatpush1.msra.mxu0 %v216
  %338 = vmatprep.subr.mxu0 0.0
  %339 = vmatpush1.msra.mxu0 0.0
  %340 = vmatprep.subr.mxu0 0.0
  %341 = vmatpush1.msra.mxu0 0.0
  %342 = vmatprep.subr.mxu0 0.0
  %343 = vmatpush1.msra.mxu0 0.0
  %344 = vmatprep.subr.mxu0 0.0
  %345 = vmatpush1.msra.mxu0 0.0
  %346 = vmatprep.subr.mxu0 0.0
  %347 = vmatpush1.msra.mxu0 0.0
  %348 = vmatprep.subr.mxu0 0.0
  %349 = vmatpush1.msra.mxu0 0.0
  %350 = vmatprep.subr.mxu0 0.0
  %351 = vmatpush1.msra.mxu0 0.0
  %352 = vmatprep.subr.mxu0 0.0
  %353 = vmatpush1.msra.mxu0 0.0
  %354 = vmatprep.mubr.f32.mxu0 %v219
  %355 = vmatmul.mubr.f32.gmra.mrb[0].mxu0 %v11
  %v356 = vpop.f32.mrb[0].mxu0
  %v357 = vadd.f32 0.0, %v356
  %v358 = vpop.f32.mrb[0].mxu0
  %359 = vmatprep.mubr.f32.mxu0 %v222
  %360 = vmatmul.mubr.f32.gmra.mrb[0].mxu0 %v13
  %v361 = vpop.f32.mrb[0].mxu0
  %v362 = vadd.f32 0.0, %v361
  %v363 = vpop.f32.mrb[0].mxu0
  %364 = vmatprep.mubr.f32.mxu0 %v225
  %365 = vmatmul.mubr.f32.gmra.mrb[0].mxu0 %v15
  %v366 = vpop.f32.mrb[0].mxu0
  %v367 = vadd.f32 0.0, %v366
  %v368 = vpop.f32.mrb[0].mxu0
  %369 = vmatprep.mubr.f32.mxu0 %v228
  %370 = vmatmul.mubr.f32.gmra.mrb[0].mxu0 %v17
  %v371 = vpop.f32.mrb[0].mxu0
  %v372 = vadd.f32 0.0, %v371
  %v373 = vpop.f32.mrb[0].mxu0
  %374 = vmatprep.mubr.f32.mxu0 %v231
  %375 = vmatmul.mubr.f32.gmra.mrb[0].mxu0 %v19
  %v376 = vpop.f32.mrb[0].mxu0
  %v377 = vadd.f32 0.0, %v376
  %v378 = vpop.f32.mrb[0].mxu0
  %379 = vmatprep.mubr.f32.mxu0 %v234
  %380 = vmatmul.mubr.f32.gmra.mrb[0].mxu0 %v21
  %v381 = vpop.f32.mrb[0].mxu0
  %v382 = vadd.f32 0.0, %v381
  %v383 = vpop.f32.mrb[0].mxu0
  %384 = vmatprep.mubr.f32.mxu0 %v237
  %385 = vmatmul.mubr.f32.gmra.mrb[0].mxu0 %v23
  %v386 = vpop.f32.mrb[0].mxu0
  %v387 = vadd.f32 0.0, %v386
  %v388 = vpop.f32.mrb[0].mxu0
  %389 = vmatprep.mubr.f32.mxu0 %v240
  %390 = vmatmul.mubr.f32.gmra.mrb[0].mxu0 %v25
  %v391 = vpop.f32.mrb[0].mxu0
  %v392 = vadd.f32 0.0, %v391
  %v393 = vpop.f32.mrb[0].mxu0
  %394 = vmatprep.mubr.f32.mxu0 %v243
  %395 = vmatmul.mubr.f32.gmra.mrb[0].mxu0 %v27
  %v396 = vpop.f32.mrb[0].mxu0
  %v397 = vadd.f32 0.0, %v396
  %v398 = vpop.f32.mrb[0].mxu0
  %399 = vmatprep.mubr.f32.mxu0 %v246
  %400 = vmatmul.mubr.f32.gmra.mrb[0].mxu0 %v29
  %v401 = vpop.f32.mrb[0].mxu0
  %v402 = vadd.f32 0.0, %v401
  %v403 = vpop.f32.mrb[0].mxu0
  %404 = vmatprep.mubr.f32.mxu0 %v249
  %405 = vmatmul.mubr.f32.gmra.mrb[0].mxu0 %v31
  %v406 = vpop.f32.mrb[0].mxu0
  %v407 = vadd.f32 0.0, %v406
  %v408 = vpop.f32.mrb[0].mxu0
  %409 = vmatprep.mubr.f32.mxu0 %v252
  %410 = vmatmul.mubr.f32.gmra.mrb[0].mxu0 %v33
  %v411 = vpop.f32.mrb[0].mxu0
  %v412 = vadd.f32 0.0, %v411
  %v413 = vpop.f32.mrb[0].mxu0
  %414 = vmatprep.mubr.f32.mxu0 %v255
  %415 = vmatmul.mubr.f32.gmra.mrb[0].mxu0 %v35
  %v416 = vpop.f32.mrb[0].mxu0
  %v417 = vadd.f32 0.0, %v416
  %v418 = vpop.f32.mrb[0].mxu0
  %419 = vmatprep.mubr.f32.mxu0 %v258
  %420 = vmatmul.mubr.f32.gmra.mrb[0].mxu0 %v37
  %v421 = vpop.f32.mrb[0].mxu0
  %v422 = vadd.f32 0.0, %v421
  %v423 = vpop.f32.mrb[0].mxu0
  %424 = vmatprep.mubr.f32.mxu0 %v261
  %425 = vmatmul.mubr.f32.gmra.mrb[0].mxu0 %v39
  %v426 = vpop.f32.mrb[0].mxu0
  %v427 = vadd.f32 0.0, %v426
  %v428 = vpop.f32.mrb[0].mxu0
  %429 = vmatprep.mubr.f32.mxu0 %v264
  %430 = vmatmul.mubr.f32.gmra.mrb[0].mxu0 %v41
  %v431 = vpop.f32.mrb[0].mxu0
  %v432 = vadd.f32 0.0, %v431
  %v433 = vpop.f32.mrb[0].mxu0
  %434 = vmatprep.mubr.f32.mxu0 %v267
  %435 = vmatmul.mubr.f32.gmra.mrb[0].mxu0 %v43
  %v436 = vpop.f32.mrb[0].mxu0
  %v437 = vadd.f32 0.0, %v436
  %v438 = vpop.f32.mrb[0].mxu0
  %439 = vmatprep.mubr.f32.mxu0 %v270
  %440 = vmatmul.mubr.f32.gmra.mrb[0].mxu0 %v45
  %v441 = vpop.f32.mrb[0].mxu0
  %v442 = vadd.f32 0.0, %v441
  %v443 = vpop.f32.mrb[0].mxu0
  %444 = vmatprep.mubr.f32.mxu0 %v273
  %445 = vmatmul.mubr.f32.gmra.mrb[0].mxu0 %v47
  %v446 = vpop.f32.mrb[0].mxu0
  %v447 = vadd.f32 0.0, %v446
  %v448 = vpop.f32.mrb[0].mxu0
  %449 = vmatprep.mubr.f32.mxu0 %v276
  %450 = vmatmul.mubr.f32.gmra.mrb[0].mxu0 %v49
  %v451 = vpop.f32.mrb[0].mxu0
  %v452 = vadd.f32 0.0, %v451
  %v453 = vpop.f32.mrb[0].mxu0
  %454 = vmatprep.mubr.f32.mxu0 %v279
  %455 = vmatmul.mubr.f32.gmra.mrb[0].mxu0 %v51
  %v456 = vpop.f32.mrb[0].mxu0
  %v457 = vadd.f32 0.0, %v456
  %v458 = vpop.f32.mrb[0].mxu0
  %459 = vmatprep.mubr.f32.mxu0 %v282
  %460 = vmatmul.mubr.f32.gmra.mrb[0].mxu0 %v53
  %v461 = vpop.f32.mrb[0].mxu0
  %v462 = vadd.f32 0.0, %v461
  %v463 = vpop.f32.mrb[0].mxu0
  %464 = vmatprep.mubr.f32.mxu0 %v285
  %465 = vmatmul.mubr.f32.gmra.mrb[0].mxu0 %v55
  %v466 = vpop.f32.mrb[0].mxu0
  %v467 = vadd.f32 0.0, %v466
  %v468 = vpop.f32.mrb[0].mxu0
  %469 = vmatprep.mubr.f32.mxu0 %v288
  %470 = vmatmul.mubr.f32.gmra.mrb[0].mxu0 %v57
  %v471 = vpop.f32.mrb[0].mxu0
  %v472 = vadd.f32 0.0, %v471
  %v473 = vpop.f32.mrb[0].mxu0
  %474 = vdwg.mxu0
  %s475 = smul.u32 0, 24
  %s476 = scalar_lea.vmem %s2, %s475
  %477 = vst [vmem:[%s476] sm:$0xff] %v357
  %478 = vst [vmem:[%s476 + $0x8] sm:$0xff] %v362
  %479 = vst [vmem:[%s476 + $0x10] sm:$0xff] %v367
  %480 = vst [vmem:[%s476 + $0x18] sm:$0xff] %v372
  %481 = vst [vmem:[%s476 + $0x20] sm:$0xff] %v377
  %482 = vst [vmem:[%s476 + $0x28] sm:$0xff] %v382
  %483 = vst [vmem:[%s476 + $0x30] sm:$0xff] %v387
  %484 = vst [vmem:[%s476 + $0x38] sm:$0xff] %v392
  %485 = vst [vmem:[%s476 + $0x40] sm:$0xff] %v397
  %486 = vst [vmem:[%s476 + $0x48] sm:$0xff] %v402
  %487 = vst [vmem:[%s476 + $0x50] sm:$0xff] %v407
  %488 = vst [vmem:[%s476 + $0x58] sm:$0xff] %v412
  %489 = vst [vmem:[%s476 + $0x60] sm:$0xff] %v417
  %490 = vst [vmem:[%s476 + $0x68] sm:$0xff] %v422
  %491 = vst [vmem:[%s476 + $0x70] sm:$0xff] %v427
  %492 = vst [vmem:[%s476 + $0x78] sm:$0xff] %v432
  %493 = vst [vmem:[%s476 + $0x80] sm:$0xff] %v437
  %494 = vst [vmem:[%s476 + $0x88] sm:$0xff] %v442
  %495 = vst [vmem:[%s476 + $0x90] sm:$0xff] %v447
  %496 = vst [vmem:[%s476 + $0x98] sm:$0xff] %v452
  %497 = vst [vmem:[%s476 + $0xa0] sm:$0xff] %v457
  %498 = vst [vmem:[%s476 + $0xa8] sm:$0xff] %v462
  %499 = vst [vmem:[%s476 + $0xb0] sm:$0xff] %v467
  %500 = vst [vmem:[%s476 + $0xb8] sm:$0xff] %v472
  // Predicated region
  $region10: #{blosum_embedding.1} parent=0 // pred_check
    _
  $region11: #{blosum_embedding.1} parent=0 // pred_check_branch
    %502 = sbr.rel (0) target = $region13
  $region12: #{blosum_embedding.1} parent=0 // pred_region
    _
  $region13: #{blosum_embedding.1} parent=0 // pred_fallthru
    _
  // Predicated region
  $region14: #{blosum_embedding.1} parent=0 // pred_check
    _
  $region15: #{blosum_embedding.1} parent=0 // pred_check_branch
    %504 = sbr.rel (0) target = $region17
  $region16: #{blosum_embedding.1} parent=0 // pred_region
    _
  $region17: #{blosum_embedding.1} parent=0 // pred_fallthru
    _

</llo_original>
